<compile_context>
chip_gen: v7x
topology: tpu7x:2x2x1
jax: 0.10.0
libtpu: 0.0.40
codegen_flags: <defaults>
</compile_context>

<pallas_src>
import jax
import jax.numpy as jnp
import numpy as np
from jax import lax
from jax.experimental import pallas as pl
from jax.experimental.pallas import tpu as pltpu

KSIZE = 3  # kernel_size


def _resblock_kernel(x_ref, w1_ref, b1_ref, w2_ref, b2_ref, o_ref):
    # x_ref  : (N, H, WC)      lane-dense activation slab (WC = W*C), f32
    # w*_ref : (3*WC, WC)      banded bf16 conv weights (kh stacked on the K axis)
    # b*_ref : (1, WC)         bias tiled across W, f32
    # o_ref  : (N, H, WC)      lane-dense output slab, f32
    Nb, H, WC = x_ref.shape
    x = x_ref[...]                                       # full-lane f32 load

    def conv3x3(a_f32, wband_ref):
        # One MXU contraction per conv: K = 3*WC folds the three kh taps; the kw taps
        # live inside the banded weight, so there are no width shifts or masks at all.
        a = a_f32.astype(jnp.bfloat16)
        zrow = jnp.zeros((Nb, 1, WC), jnp.bfloat16)
        up = jnp.concatenate([zrow, a[:, :H - 1, :]], axis=1)   # row h-1   (kh = 0)
        dn = jnp.concatenate([a[:, 1:, :], zrow], axis=1)       # row h+1   (kh = 2)
        t = jnp.concatenate([up, a, dn], axis=-1)               # (N, H, 3*WC); concat
        #                                                         at 128-lane boundaries
        return jnp.dot(t.reshape(Nb * H, KSIZE * WC), wband_ref[...],
                       preferred_element_type=jnp.float32)      # (N*H, WC) f32

    # conv1 + bias + ReLU (single post-dot add, full-lane VPU work).
    h1 = jnp.maximum(conv3x3(x, w1_ref) + b1_ref[...], 0.0)     # (N*H, WC)

    # conv2 + (bias + residual) folded into one broadcasted add.
    y = conv3x3(h1.reshape(Nb, H, WC), w2_ref) + (b2_ref[...] + x.reshape(Nb * H, WC))

    # Lane-dense, unmasked full-lane store.
    o_ref[...] = y.reshape(Nb, H, WC).astype(o_ref.dtype)


def prep_resblock_params(w1, b1, w2, b2, W):
    """One-time (non-jitted) parameter prep.

    Builds, per conv, a bf16 banded matmul weight of shape (3*W*C, W*C): block-
    tridiagonal in W (zeros at the width boundaries, so no in-kernel masking), with the
    three kh taps stacked along K, plus the bias tiled across W to match the lane-dense
    (w*C + c) output layout.
    """
    def banded(w_oihw):
        w = np.asarray(w_oihw, np.float32)               # (Co, Ci, 3, 3) PyTorch OIHW
        Co, Ci, KH, KW = w.shape
        WC = W * Ci
        band = np.zeros((KH, WC, WC), np.float32)
        for kh in range(KH):
            for kw in range(KW):
                dw = kw - 1                              # source column = out column + dw
                for wc in range(W):
                    wp = wc + dw
                    if 0 <= wp < W:
                        band[kh, wp * Ci:(wp + 1) * Ci, wc * Co:(wc + 1) * Co] = \
                            w[:, :, kh, kw].T            # (ci, co) block
        return jnp.asarray(band.reshape(KH * WC, WC), jnp.bfloat16)

    def tiled_bias(b):
        return jnp.asarray(np.tile(np.asarray(b, np.float32), W).reshape(1, -1))

    return banded(w1), tiled_bias(b1), banded(w2), tiled_bias(b2)


@jax.jit
def resblock_forward(x_nchw, w1_band, b1_t, w2_band, b2_t):
    """x_nchw: (N, C, H, W) f32; w*_band/b*_t: outputs of prep_resblock_params."""
    N, C, H, W = x_nchw.shape
    WC = W * C

    # NCHW -> lane-dense (N, H, W*C) slab.  Conversion happens only at the module
    # boundary; inside a full RCAN body this layout would be kept end-to-end.
    x_slab = jnp.transpose(x_nchw, (0, 2, 3, 1)).reshape(N, H, WC)

    out_slab = pl.pallas_call(
        _resblock_kernel,
        out_shape=jax.ShapeDtypeStruct((N, H, WC), x_nchw.dtype),
        grid_spec=pltpu.PrefetchScalarGridSpec(
            num_scalar_prefetch=0,
            # Whole batch in one grid step: per-step blocks are only a few KiB, so the
            # ~0.35 us grid-step overhead would dominate with a per-image grid.
            grid=(1,),
            in_specs=[
                pl.BlockSpec((N, H, WC), lambda i: (0, 0, 0)),
                pl.BlockSpec((KSIZE * WC, WC), lambda i: (0, 0)),
                pl.BlockSpec((1, WC), lambda i: (0, 0)),
                pl.BlockSpec((KSIZE * WC, WC), lambda i: (0, 0)),
                pl.BlockSpec((1, WC), lambda i: (0, 0)),
            ],
            out_specs=pl.BlockSpec((N, H, WC), lambda i: (0, 0, 0)),
        ),
        compiler_params=pltpu.CompilerParams(
            dimension_semantics=("arbitrary",),
            vmem_limit_bytes=32 * 1024 * 1024,
        ),
    )(x_slab, w1_band, b1_t, w2_band, b2_t)

    return jnp.transpose(out_slab.reshape(N, H, W, C), (0, 3, 1, 2))     # back to NCHW


def _reference_forward(x_nchw, w1, b1, w2, b2):
    """Pure-JAX f32 reference (mirrors PyTorch Conv2d, padding=1)."""
    dn = lax.conv_dimension_numbers(x_nchw.shape, w1.shape, ("NCHW", "OIHW", "NCHW"))
    h = lax.conv_general_dilated(x_nchw, w1, (1, 1), ((1, 1), (1, 1)),
                                 dimension_numbers=dn)
    h = h + b1.reshape(1, -1, 1, 1)
    h = jnp.maximum(h, 0.0)
    y = lax.conv_general_dilated(h, w2, (1, 1), ((1, 1), (1, 1)),
                                 dimension_numbers=dn)
    y = y + b2.reshape(1, -1, 1, 1)
    return y + x_nchw


if __name__ == "__main__":
    # Small shapes consistent with the module; W * C == 128 -> lane-dense 128-wide slab.
    N, C, H, W = 2, 8, 16, 16

    key = jax.random.PRNGKey(0)
    kx, kw1, kb1, kw2, kb2 = jax.random.split(key, 5)

    x = jax.random.normal(kx, (N, C, H, W), dtype=jnp.float32)
    # PyTorch Conv2d parameter shapes: OIHW weights + bias.
    w1 = jax.random.normal(kw1, (C, C, KSIZE, KSIZE), dtype=jnp.float32) * 0.1
    b1 = jax.random.normal(kb1, (C,), dtype=jnp.float32) * 0.1
    w2 = jax.random.normal(kw2, (C, C, KSIZE, KSIZE), dtype=jnp.float32) * 0.1
    b2 = jax.random.normal(kb2, (C,), dtype=jnp.float32) * 0.1

    # Weight prep is done once, outside the jitted forward (per perf review).
    w1_band, b1_t, w2_band, b2_t = prep_resblock_params(w1, b1, w2, b2, W)

    out = jax.block_until_ready(resblock_forward(x, w1_band, b1_t, w2_band, b2_t))
    ref = jax.block_until_ready(_reference_forward(x, w1, b1, w2, b2))

    # bf16 MXU staging (activations + banded weights) with f32 accumulation -> compare
    # against the pure-f32 reference with a correspondingly relaxed tolerance.
    np.testing.assert_allclose(np.asarray(out), np.asarray(ref), rtol=2e-2, atol=2e-2)

    print("KERNEL_OK")
</pallas_src>

<mosaic_0001>
module attributes {stable_mosaic.version = 11 : i64} {
  func.func @_resblock_kernel(%arg0: i32, %arg1: memref<2x16x128xf32, #tpu.memory_space<vmem>>, %arg2: memref<384x128xbf16, #tpu.memory_space<vmem>>, %arg3: memref<1x128xf32, #tpu.memory_space<vmem>>, %arg4: memref<384x128xbf16, #tpu.memory_space<vmem>>, %arg5: memref<1x128xf32, #tpu.memory_space<vmem>>, %arg6: memref<2x16x128xf32, #tpu.memory_space<vmem>>) attributes {dimension_semantics = [#tpu.dimension_semantics<arbitrary>], iteration_bounds = array<i64: 1>, scalar_prefetch = 0 : i64, scratch_operands = 0 : i64, tpu.core_type = #tpu.core_type<tc>, window_params = [{pipeline_mode = #tpu.pipeline_mode<synchronous>, transform_indices = @transform_0, window_bounds = array<i64: 2, 16, 128>}, {pipeline_mode = #tpu.pipeline_mode<synchronous>, transform_indices = @transform_1, window_bounds = array<i64: 384, 128>}, {pipeline_mode = #tpu.pipeline_mode<synchronous>, transform_indices = @transform_2, window_bounds = array<i64: 1, 128>}, {pipeline_mode = #tpu.pipeline_mode<synchronous>, transform_indices = @transform_3, window_bounds = array<i64: 384, 128>}, {pipeline_mode = #tpu.pipeline_mode<synchronous>, transform_indices = @transform_4, window_bounds = array<i64: 1, 128>}, {pipeline_mode = #tpu.pipeline_mode<synchronous>, transform_indices = @transform_5, window_bounds = array<i64: 2, 16, 128>}]} {
    %c0 = arith.constant 0 : index
    %c0_0 = arith.constant 0 : index
    %c0_1 = arith.constant 0 : index
    %0 = vector.load %arg1[%c0, %c0_0, %c0_1] : memref<2x16x128xf32, #tpu.memory_space<vmem>>, vector<2x16x128xf32>
    %1 = arith.truncf %0 : vector<2x16x128xf32> to vector<2x16x128xbf16>
    %cst = arith.constant 0.000000e+00 : bf16
    %2 = vector.broadcast %cst : bf16 to vector<2x1x128xbf16>
    %3 = vector.extract_strided_slice %1 {offsets = [0, 0, 0], sizes = [2, 15, 128], strides = [1, 1, 1]} : vector<2x16x128xbf16> to vector<2x15x128xbf16>
    %4 = tpu.concatenate %2, %3 in 1 : vector<2x1x128xbf16>, vector<2x15x128xbf16> -> vector<2x16x128xbf16>
    %5 = vector.extract_strided_slice %1 {offsets = [0, 1, 0], sizes = [2, 15, 128], strides = [1, 1, 1]} : vector<2x16x128xbf16> to vector<2x15x128xbf16>
    %6 = tpu.concatenate %5, %2 in 1 : vector<2x15x128xbf16>, vector<2x1x128xbf16> -> vector<2x16x128xbf16>
    %7 = tpu.concatenate %4, %1, %6 in 2 : vector<2x16x128xbf16>, vector<2x16x128xbf16>, vector<2x16x128xbf16> -> vector<2x16x384xbf16>
    %8 = vector.shape_cast %7 : vector<2x16x384xbf16> to vector<32x384xbf16>
    %c0_2 = arith.constant 0 : index
    %c0_3 = arith.constant 0 : index
    %9 = vector.load %arg2[%c0_2, %c0_3] : memref<384x128xbf16, #tpu.memory_space<vmem>>, vector<384x128xbf16>
    %cst_4 = arith.constant dense<0.000000e+00> : vector<32x128xf32>
    %10 = tpu.matmul %8, %9, %cst_4 {dimension_numbers = #tpu.dot_dimension_numbers<[1], [0], [0], [1], [0, 0, 1, 1], [], []>} : vector<32x384xbf16>, vector<384x128xbf16>, vector<32x128xf32> -> vector<32x128xf32>
    %c0_5 = arith.constant 0 : index
    %c0_6 = arith.constant 0 : index
    %11 = vector.load %arg3[%c0_5, %c0_6] : memref<1x128xf32, #tpu.memory_space<vmem>>, vector<1x128xf32>
    %12 = vector.broadcast %11 : vector<1x128xf32> to vector<32x128xf32>
    %13 = arith.addf %10, %12 : vector<32x128xf32>
    %cst_7 = arith.constant 0.000000e+00 : f32
    %14 = vector.broadcast %cst_7 : f32 to vector<32x128xf32>
    %15 = arith.maximumf %13, %14 : vector<32x128xf32>
    %16 = vector.shape_cast %15 : vector<32x128xf32> to vector<2x16x128xf32>
    %17 = arith.truncf %16 : vector<2x16x128xf32> to vector<2x16x128xbf16>
    %cst_8 = arith.constant 0.000000e+00 : bf16
    %18 = vector.broadcast %cst_8 : bf16 to vector<2x1x128xbf16>
    %19 = vector.extract_strided_slice %17 {offsets = [0, 0, 0], sizes = [2, 15, 128], strides = [1, 1, 1]} : vector<2x16x128xbf16> to vector<2x15x128xbf16>
    %20 = tpu.concatenate %18, %19 in 1 : vector<2x1x128xbf16>, vector<2x15x128xbf16> -> vector<2x16x128xbf16>
    %21 = vector.extract_strided_slice %17 {offsets = [0, 1, 0], sizes = [2, 15, 128], strides = [1, 1, 1]} : vector<2x16x128xbf16> to vector<2x15x128xbf16>
    %22 = tpu.concatenate %21, %18 in 1 : vector<2x15x128xbf16>, vector<2x1x128xbf16> -> vector<2x16x128xbf16>
    %23 = tpu.concatenate %20, %17, %22 in 2 : vector<2x16x128xbf16>, vector<2x16x128xbf16>, vector<2x16x128xbf16> -> vector<2x16x384xbf16>
    %24 = vector.shape_cast %23 : vector<2x16x384xbf16> to vector<32x384xbf16>
    %c0_9 = arith.constant 0 : index
    %c0_10 = arith.constant 0 : index
    %25 = vector.load %arg4[%c0_9, %c0_10] : memref<384x128xbf16, #tpu.memory_space<vmem>>, vector<384x128xbf16>
    %cst_11 = arith.constant dense<0.000000e+00> : vector<32x128xf32>
    %26 = tpu.matmul %24, %25, %cst_11 {dimension_numbers = #tpu.dot_dimension_numbers<[1], [0], [0], [1], [0, 0, 1, 1], [], []>} : vector<32x384xbf16>, vector<384x128xbf16>, vector<32x128xf32> -> vector<32x128xf32>
    %c0_12 = arith.constant 0 : index
    %c0_13 = arith.constant 0 : index
    %27 = vector.load %arg5[%c0_12, %c0_13] : memref<1x128xf32, #tpu.memory_space<vmem>>, vector<1x128xf32>
    %28 = vector.shape_cast %0 : vector<2x16x128xf32> to vector<32x128xf32>
    %29 = vector.broadcast %27 : vector<1x128xf32> to vector<32x128xf32>
    %30 = arith.addf %29, %28 : vector<32x128xf32>
    %31 = arith.addf %26, %30 : vector<32x128xf32>
    %32 = vector.shape_cast %31 : vector<32x128xf32> to vector<2x16x128xf32>
    %c0_14 = arith.constant 0 : index
    %c0_15 = arith.constant 0 : index
    %c0_16 = arith.constant 0 : index
    %33 = vector.load %arg6[%c0_14, %c0_15, %c0_16] : memref<2x16x128xf32, #tpu.memory_space<vmem>>, vector<2x16x128xf32>
    tpu.vector_store %arg6[%c0_14, %c0_15, %c0_16], %32 {strides = array<i32>} : memref<2x16x128xf32, #tpu.memory_space<vmem>>, vector<2x16x128xf32>,
    return
  }
  func.func @transform_0(%arg0: i32) -> (i32, i32, i32) {
    %c0_i32 = arith.constant 0 : i32
    %c0_i32_0 = arith.constant 0 : i32
    %c0_i32_1 = arith.constant 0 : i32
    %c0_i32_2 = arith.constant 0 : i32
    return %c0_i32, %c0_i32_0, %c0_i32_1 : i32, i32, i32
  }
  func.func @transform_1(%arg0: i32) -> (i32, i32) {
    %c0_i32 = arith.constant 0 : i32
    %c0_i32_0 = arith.constant 0 : i32
    %c0_i32_1 = arith.constant 0 : i32
    return %c0_i32, %c0_i32_0 : i32, i32
  }
  func.func @transform_2(%arg0: i32) -> (i32, i32) {
    %c0_i32 = arith.constant 0 : i32
    %c0_i32_0 = arith.constant 0 : i32
    %c0_i32_1 = arith.constant 0 : i32
    return %c0_i32, %c0_i32_0 : i32, i32
  }
  func.func @transform_3(%arg0: i32) -> (i32, i32) {
    %c0_i32 = arith.constant 0 : i32
    %c0_i32_0 = arith.constant 0 : i32
    %c0_i32_1 = arith.constant 0 : i32
    return %c0_i32, %c0_i32_0 : i32, i32
  }
  func.func @transform_4(%arg0: i32) -> (i32, i32) {
    %c0_i32 = arith.constant 0 : i32
    %c0_i32_0 = arith.constant 0 : i32
    %c0_i32_1 = arith.constant 0 : i32
    return %c0_i32, %c0_i32_0 : i32, i32
  }
  func.func @transform_5(%arg0: i32) -> (i32, i32, i32) {
    %c0_i32 = arith.constant 0 : i32
    %c0_i32_0 = arith.constant 0 : i32
    %c0_i32_1 = arith.constant 0 : i32
    %c0_i32_2 = arith.constant 0 : i32
    return %c0_i32, %c0_i32_0, %c0_i32_1 : i32, i32, i32
  }
}

</mosaic_0001>

<llo_original>
// kernel: resblock_forward.1
$region0: #{resblock_forward.1}
  #allocation0 [shape = 'u32[]', space=smem, size = 0x4, offset = 0x4, fixed_abs, tag = 'smem constant byte address 0x4 - core index']
  #allocation1 [shape = 'u32[144,128]{1,0:T(1,128)}', space=vmem, size = 0x12000, scoped, tag = 'internal scratch']
  %s0 = inlined_call_operand.vmem [shape: f32[2,16,128], index: 0, kind: input, shape index: {}]
  %s1 = inlined_call_operand.vmem [shape: bf16[384,128], index: 1, kind: input, shape index: {}]
  %s2 = inlined_call_operand.vmem [shape: f32[1,128], index: 2, kind: input, shape index: {}]
  %s3 = inlined_call_operand.vmem [shape: bf16[384,128], index: 3, kind: input, shape index: {}]
  %s4 = inlined_call_operand.vmem [shape: f32[1,128], index: 4, kind: input, shape index: {}]
  %s5 = inlined_call_operand.vmem [shape: f32[2,16,128], index: 5, kind: output, shape index: {}]
  %s6 = sld [smem:[#allocation0]]
  $region30: #{resblock_forward.1} parent=0
    _
  %s8 = ssub.s32 1, %s6
  %s9 = scalar_select 0, %s8, %s6
  // Predicated region
  $region2: #{resblock_forward.1} parent=0 // pred_check
    _
  $region3: #{resblock_forward.1} parent=0 // pred_check_branch
    %11 = sbr.rel (0) target = $region5
  $region4: #{resblock_forward.1} parent=0 // pred_region
    _
  $region5: #{resblock_forward.1} parent=0 // pred_fallthru
    _
  // Predicated region
  $region6: #{resblock_forward.1} parent=0 // pred_check
    _
  $region7: #{resblock_forward.1} parent=0 // pred_check_branch
    %13 = sbr.rel (0) target = $region9
  $region8: #{resblock_forward.1} parent=0 // pred_region
    _
  $region9: #{resblock_forward.1} parent=0 // pred_fallthru
    _
  // Predicated region
  $region10: #{resblock_forward.1} parent=0 // pred_check
    _
  $region11: #{resblock_forward.1} parent=0 // pred_check_branch
    %15 = sbr.rel (0) target = $region13
  $region12: #{resblock_forward.1} parent=0 // pred_region
    _
  $region13: #{resblock_forward.1} parent=0 // pred_fallthru
    _
  // Predicated region
  $region14: #{resblock_forward.1} parent=0 // pred_check
    _
  $region15: #{resblock_forward.1} parent=0 // pred_check_branch
    %17 = sbr.rel (0) target = $region17
  $region16: #{resblock_forward.1} parent=0 // pred_region
    _
  $region17: #{resblock_forward.1} parent=0 // pred_fallthru
    _
  // Predicated region
  $region18: #{resblock_forward.1} parent=0 // pred_check
    _
  $region19: #{resblock_forward.1} parent=0 // pred_check_branch
    %19 = sbr.rel (0) target = $region21
  $region20: #{resblock_forward.1} parent=0 // pred_region
    _
  $region21: #{resblock_forward.1} parent=0 // pred_fallthru
    _
  %v21 = vld [vmem:[%s0] sm:$0xff]
  %v22 = vld [vmem:[%s0 + $0x8] sm:$0xff]
  %v23 = vld [vmem:[%s0 + $0x10] sm:$0xff]
  %v24 = vld [vmem:[%s0 + $0x18] sm:$0xff]
  %v25 = vpack.c.bf16 %v22, %v21
  %v26 = vpack.c.bf16 %v24, %v23
  %v28 = vshrl.u32 %v25, 16
  %v30 = vrot.slane %v28, 7
  %v31 = vshll.u32 %v25, 16
  %v33 = vor.u32 %v30, %v31
  %v35 = vshrl.u32 %v26, 16
  %v37 = vrot.slane %v35, 7
  %v38 = vshll.u32 %v26, 16
  %v40 = vor.u32 %v37, %v38
  %vm43 = vcmask 1040384
  %vm44 = vsmask.f32 256
  %vm45 = vmand %vm43, %vm44
  %v46 = vsel %vm45, 0, %v33
  %v47 = vsel %vm45, 0, %v40
  %v48 = vrot.slane %v31, 1
  %v49 = vor.u32 %v28, %v48
  %v50 = vrot.slane %v38, 1
  %v51 = vor.u32 %v35, %v50
  %vm54 = vcmask 1047552
  %vm55 = vsmask.f32 7424
  %vm56 = vmand %vm54, %vm55
  %v57 = vsel %vm56, %v49, 0
  %v58 = vsel %vm56, %v51, 0
  %v59 = vld [vmem:[%s1] sm:$0xf]
  %v60 = vld [vmem:[%s1 + $0x4] sm:$0xf]
  %v61 = vld [vmem:[%s1 + $0x8] sm:$0xf]
  %v62 = vld [vmem:[%s1 + $0xc] sm:$0xf]
  %v63 = vld [vmem:[%s1 + $0x10] sm:$0xf]
  %v64 = vld [vmem:[%s1 + $0x14] sm:$0xf]
  %v65 = vld [vmem:[%s1 + $0x18] sm:$0xf]
  %v66 = vld [vmem:[%s1 + $0x1c] sm:$0xf]
  %v67 = vld [vmem:[%s1 + $0x20] sm:$0xf]
  %v68 = vld [vmem:[%s1 + $0x24] sm:$0xf]
  %v69 = vld [vmem:[%s1 + $0x28] sm:$0xf]
  %v70 = vld [vmem:[%s1 + $0x2c] sm:$0xf]
  %v71 = vld [vmem:[%s1 + $0x30] sm:$0xf]
  %v72 = vld [vmem:[%s1 + $0x34] sm:$0xf]
  %v73 = vld [vmem:[%s1 + $0x38] sm:$0xf]
  %v74 = vld [vmem:[%s1 + $0x3c] sm:$0xf]
  %v75 = vld [vmem:[%s1 + $0x40] sm:$0xf]
  %v76 = vld [vmem:[%s1 + $0x44] sm:$0xf]
  %v77 = vld [vmem:[%s1 + $0x48] sm:$0xf]
  %v78 = vld [vmem:[%s1 + $0x4c] sm:$0xf]
  %v79 = vld [vmem:[%s1 + $0x50] sm:$0xf]
  %v80 = vld [vmem:[%s1 + $0x54] sm:$0xf]
  %v81 = vld [vmem:[%s1 + $0x58] sm:$0xf]
  %v82 = vld [vmem:[%s1 + $0x5c] sm:$0xf]
  %v83 = vld [vmem:[%s1 + $0x60] sm:$0xf]
  %v84 = vld [vmem:[%s1 + $0x64] sm:$0xf]
  %v85 = vld [vmem:[%s1 + $0x68] sm:$0xf]
  %v86 = vld [vmem:[%s1 + $0x6c] sm:$0xf]
  %v87 = vld [vmem:[%s1 + $0x70] sm:$0xf]
  %v88 = vld [vmem:[%s1 + $0x74] sm:$0xf]
  %v89 = vld [vmem:[%s1 + $0x78] sm:$0xf]
  %v90 = vld [vmem:[%s1 + $0x7c] sm:$0xf]
  %v91 = vld [vmem:[%s1 + $0x80] sm:$0xf]
  %v92 = vld [vmem:[%s1 + $0x84] sm:$0xf]
  %v93 = vld [vmem:[%s1 + $0x88] sm:$0xf]
  %v94 = vld [vmem:[%s1 + $0x8c] sm:$0xf]
  %v95 = vld [vmem:[%s1 + $0x90] sm:$0xf]
  %v96 = vld [vmem:[%s1 + $0x94] sm:$0xf]
  %v97 = vld [vmem:[%s1 + $0x98] sm:$0xf]
  %v98 = vld [vmem:[%s1 + $0x9c] sm:$0xf]
  %v99 = vld [vmem:[%s1 + $0xa0] sm:$0xf]
  %v100 = vld [vmem:[%s1 + $0xa4] sm:$0xf]
  %v101 = vld [vmem:[%s1 + $0xa8] sm:$0xf]
  %v102 = vld [vmem:[%s1 + $0xac] sm:$0xf]
  %v103 = vld [vmem:[%s1 + $0xb0] sm:$0xf]
  %v104 = vld [vmem:[%s1 + $0xb4] sm:$0xf]
  %v105 = vld [vmem:[%s1 + $0xb8] sm:$0xf]
  %v106 = vld [vmem:[%s1 + $0xbc] sm:$0xf]
  %v107 = vld [vmem:[%s2] sm:$0x1]
  %v109 = vlaneseq
  %v110 = vshrl.u32 %v109, 7
  %v111 = vsub.s32 0, %v110
  %v112 = vrot.slane %v107, %v111
  %v162 = vunpack.c.l.b16 %v59
  %v163 = vunpack.c.l.b16 %v60
  %v164 = vunpack.c.l.b16 %v61
  %v165 = vunpack.c.l.b16 %v62
  %v166 = vunpack.c.l.b16 %v63
  %v167 = vunpack.c.l.b16 %v64
  %v168 = vunpack.c.l.b16 %v65
  %v169 = vunpack.c.l.b16 %v66
  %v170 = vunpack.c.l.b16 %v67
  %v171 = vunpack.c.l.b16 %v68
  %v172 = vunpack.c.l.b16 %v69
  %v173 = vunpack.c.l.b16 %v70
  %v174 = vunpack.c.l.b16 %v71
  %v175 = vunpack.c.l.b16 %v72
  %v176 = vunpack.c.l.b16 %v73
  %v177 = vunpack.c.l.b16 %v74
  %v178 = vunpack.c.l.b16 %v75
  %v179 = vunpack.c.l.b16 %v76
  %v180 = vunpack.c.l.b16 %v77
  %v181 = vunpack.c.l.b16 %v78
  %v182 = vunpack.c.l.b16 %v79
  %v183 = vunpack.c.l.b16 %v80
  %v184 = vunpack.c.l.b16 %v81
  %v185 = vunpack.c.l.b16 %v82
  %v186 = vunpack.c.l.b16 %v83
  %v187 = vunpack.c.l.b16 %v84
  %v188 = vunpack.c.l.b16 %v85
  %v189 = vunpack.c.l.b16 %v86
  %v190 = vunpack.c.l.b16 %v87
  %v191 = vunpack.c.l.b16 %v88
  %v192 = vunpack.c.l.b16 %v89
  %v193 = vunpack.c.l.b16 %v90
  %v194 = vunpack.c.l.b16 %v91
  %v195 = vunpack.c.l.b16 %v92
  %v196 = vunpack.c.l.b16 %v93
  %v197 = vunpack.c.l.b16 %v94
  %v198 = vunpack.c.l.b16 %v95
  %v199 = vunpack.c.l.b16 %v96
  %v200 = vunpack.c.l.b16 %v97
  %v201 = vunpack.c.l.b16 %v98
  %v202 = vunpack.c.l.b16 %v99
  %v203 = vunpack.c.l.b16 %v100
  %v204 = vunpack.c.l.b16 %v101
  %v205 = vunpack.c.l.b16 %v102
  %v206 = vunpack.c.l.b16 %v103
  %v207 = vunpack.c.l.b16 %v104
  %v208 = vunpack.c.l.b16 %v105
  %v209 = vunpack.c.l.b16 %v106
  %v210 = vpack.c.b16 %v163, %v162
  %v211 = vpack.c.b16 %v165, %v164
  %v212 = vpack.c.b16 %v167, %v166
  %v213 = vpack.c.b16 %v169, %v168
  %v214 = vpack.c.b16 %v171, %v170
  %v215 = vpack.c.b16 %v173, %v172
  %v216 = vpack.c.b16 %v175, %v174
  %v217 = vpack.c.b16 %v177, %v176
  %v218 = vpack.c.b16 %v179, %v178
  %v219 = vpack.c.b16 %v181, %v180
  %v220 = vpack.c.b16 %v183, %v182
  %v221 = vpack.c.b16 %v185, %v184
  %v222 = vpack.c.b16 %v187, %v186
  %v223 = vpack.c.b16 %v189, %v188
  %v224 = vpack.c.b16 %v191, %v190
  %v225 = vpack.c.b16 %v193, %v192
  %v226 = vpack.c.b16 %v195, %v194
  %v227 = vpack.c.b16 %v197, %v196
  %v228 = vpack.c.b16 %v199, %v198
  %v229 = vpack.c.b16 %v201, %v200
  %v230 = vpack.c.b16 %v203, %v202
  %v231 = vpack.c.b16 %v205, %v204
  %v232 = vpack.c.b16 %v207, %v206
  %v233 = vpack.c.b16 %v209, %v208
  %258 = vmatprep.subr.bf16.mxu0 0
  %259 = vmatpush1.bf16.msra.mxu0 %v210
  %260 = vmatprep.subr.bf16.mxu0 0
  %261 = vmatpush1.bf16.msra.mxu0 %v211
  %262 = vmatprep.subr.bf16.mxu0 0
  %263 = vmatpush1.bf16.msra.mxu0 %v212
  %264 = vmatprep.subr.bf16.mxu0 0
  %265 = vmatpush1.bf16.msra.mxu0 %v213
  %266 = vmatprep.subr.bf16.mxu0 0
  %267 = vmatpush1.bf16.msra.mxu0 %v214
  %268 = vmatprep.subr.bf16.mxu0 0
  %269 = vmatpush1.bf16.msra.mxu0 %v215
  %270 = vmatprep.subr.bf16.mxu0 0
  %271 = vmatpush1.bf16.msra.mxu0 %v216
  %272 = vmatprep.subr.bf16.mxu0 0
  %273 = vmatpush1.bf16.msra.mxu0 %v217
  %274 = vmatprep.subr.bf16.mxu0 0
  %275 = vmatpush1.bf16.msra.mxu0 %v218
  %276 = vmatprep.subr.bf16.mxu0 0
  %277 = vmatpush1.bf16.msra.mxu0 %v219
  %278 = vmatprep.subr.bf16.mxu0 0
  %279 = vmatpush1.bf16.msra.mxu0 %v220
  %280 = vmatprep.subr.bf16.mxu0 0
  %281 = vmatpush1.bf16.msra.mxu0 %v221
  %282 = vmatprep.subr.bf16.mxu0 0
  %283 = vmatpush1.bf16.msra.mxu0 %v222
  %284 = vmatprep.subr.bf16.mxu0 0
  %285 = vmatpush1.bf16.msra.mxu0 %v223
  %286 = vmatprep.subr.bf16.mxu0 0
  %287 = vmatpush1.bf16.msra.mxu0 %v224
  %288 = vmatprep.subr.bf16.mxu0 0
  %289 = vmatpush1.bf16.msra.mxu0 %v225
  %290 = vmatprep.mubr.bf16.mxu0 %v25
  %291 = vmatmul.mubr.bf16.gmra.mrb[0].mxu0 %v46
  %v292 = vpop.f32.mrb[0].mxu0
  %v293 = vadd.f32 %v112, %v292
  %v294 = vpop.f32.mrb[0].mxu0
  %v295 = vpop.f32.mrb[0].mxu0
  %v296 = vadd.f32 %v112, %v295
  %v297 = vpop.f32.mrb[0].mxu0
  %298 = vmatprep.mubr.bf16.mxu0 %v26
  %299 = vmatmul.mubr.bf16.gmra.mrb[0].mxu0 %v47
  %v300 = vpop.f32.mrb[0].mxu0
  %v301 = vadd.f32 %v112, %v300
  %v302 = vpop.f32.mrb[0].mxu0
  %v303 = vpop.f32.mrb[0].mxu0
  %v304 = vadd.f32 %v112, %v303
  %v305 = vpop.f32.mrb[0].mxu0
  %306 = vdwg.mxu0
  %307 = vmatprep.subr.bf16.mxu0 0
  %308 = vmatpush1.bf16.msra.mxu0 %v226
  %309 = vmatprep.subr.bf16.mxu0 0
  %310 = vmatpush1.bf16.msra.mxu0 %v227
  %311 = vmatprep.subr.bf16.mxu0 0
  %312 = vmatpush1.bf16.msra.mxu0 %v228
  %313 = vmatprep.subr.bf16.mxu0 0
  %314 = vmatpush1.bf16.msra.mxu0 %v229
  %315 = vmatprep.subr.bf16.mxu0 0
  %316 = vmatpush1.bf16.msra.mxu0 %v230
  %317 = vmatprep.subr.bf16.mxu0 0
  %318 = vmatpush1.bf16.msra.mxu0 %v231
  %319 = vmatprep.subr.bf16.mxu0 0
  %320 = vmatpush1.bf16.msra.mxu0 %v232
  %321 = vmatprep.subr.bf16.mxu0 0
  %322 = vmatpush1.bf16.msra.mxu0 %v233
  %323 = vmatprep.subr.bf16.mxu0 0
  %324 = vmatpush1.bf16.msra.mxu0 0
  %325 = vmatprep.subr.bf16.mxu0 0
  %326 = vmatpush1.bf16.msra.mxu0 0
  %327 = vmatprep.subr.bf16.mxu0 0
  %328 = vmatpush1.bf16.msra.mxu0 0
  %329 = vmatprep.subr.bf16.mxu0 0
  %330 = vmatpush1.bf16.msra.mxu0 0
  %331 = vmatprep.subr.bf16.mxu0 0
  %332 = vmatpush1.bf16.msra.mxu0 0
  %333 = vmatprep.subr.bf16.mxu0 0
  %334 = vmatpush1.bf16.msra.mxu0 0
  %335 = vmatprep.subr.bf16.mxu0 0
  %336 = vmatpush1.bf16.msra.mxu0 0
  %337 = vmatprep.subr.bf16.mxu0 0
  %338 = vmatpush1.bf16.msra.mxu0 0
  %339 = vmatprep.mubr.bf16.mxu0 0
  %340 = vmatmul.mubr.bf16.gmra.mrb[0].mxu0 %v57
  %v341 = vpop.f32.mrb[0].mxu0
  %v342 = vadd.f32 %v293, %v341
  %v343 = vpop.f32.mrb[0].mxu0
  %v344 = vpop.f32.mrb[0].mxu0
  %v345 = vadd.f32 %v296, %v344
  %v346 = vpop.f32.mrb[0].mxu0
  %347 = vmatprep.mubr.bf16.mxu0 0
  %348 = vmatmul.mubr.bf16.gmra.mrb[0].mxu0 %v58
  %v349 = vpop.f32.mrb[0].mxu0
  %v350 = vadd.f32 %v301, %v349
  %v351 = vpop.f32.mrb[0].mxu0
  %v352 = vpop.f32.mrb[0].mxu0
  %v353 = vadd.f32 %v304, %v352
  %v354 = vpop.f32.mrb[0].mxu0
  %355 = vdwg.mxu0
  %v356 = vmax.f32 %v342, 0.0
  %v357 = vmax.f32 %v345, 0.0
  %v358 = vmax.f32 %v350, 0.0
  %v359 = vmax.f32 %v353, 0.0
  %v360 = vpack.c.bf16 %v357, %v356
  %v361 = vpack.c.bf16 %v359, %v358
  %v363 = vshrl.u32 %v360, 16
  %v365 = vrot.slane %v363, 7
  %v366 = vshll.u32 %v360, 16
  %v368 = vor.u32 %v365, %v366
  %v370 = vshrl.u32 %v361, 16
  %v372 = vrot.slane %v370, 7
  %v373 = vshll.u32 %v361, 16
  %v375 = vor.u32 %v372, %v373
  %v378 = vsel %vm45, 0, %v368
  %v379 = vsel %vm45, 0, %v375
  %v380 = vrot.slane %v366, 1
  %v381 = vor.u32 %v363, %v380
  %v382 = vrot.slane %v373, 1
  %v383 = vor.u32 %v370, %v382
  %v386 = vsel %vm56, %v381, 0
  %v387 = vsel %vm56, %v383, 0
  %v388 = vld [vmem:[%s3] sm:$0xf]
  %v389 = vld [vmem:[%s3 + $0x4] sm:$0xf]
  %v390 = vld [vmem:[%s3 + $0x8] sm:$0xf]
  %v391 = vld [vmem:[%s3 + $0xc] sm:$0xf]
  %v392 = vld [vmem:[%s3 + $0x10] sm:$0xf]
  %v393 = vld [vmem:[%s3 + $0x14] sm:$0xf]
  %v394 = vld [vmem:[%s3 + $0x18] sm:$0xf]
  %v395 = vld [vmem:[%s3 + $0x1c] sm:$0xf]
  %v396 = vld [vmem:[%s3 + $0x20] sm:$0xf]
  %v397 = vld [vmem:[%s3 + $0x24] sm:$0xf]
  %v398 = vld [vmem:[%s3 + $0x28] sm:$0xf]
  %v399 = vld [vmem:[%s3 + $0x2c] sm:$0xf]
  %v400 = vld [vmem:[%s3 + $0x30] sm:$0xf]
  %v401 = vld [vmem:[%s3 + $0x34] sm:$0xf]
  %v402 = vld [vmem:[%s3 + $0x38] sm:$0xf]
  %v403 = vld [vmem:[%s3 + $0x3c] sm:$0xf]
  %v404 = vld [vmem:[%s3 + $0x40] sm:$0xf]
  %v405 = vld [vmem:[%s3 + $0x44] sm:$0xf]
  %v406 = vld [vmem:[%s3 + $0x48] sm:$0xf]
  %v407 = vld [vmem:[%s3 + $0x4c] sm:$0xf]
  %v408 = vld [vmem:[%s3 + $0x50] sm:$0xf]
  %v409 = vld [vmem:[%s3 + $0x54] sm:$0xf]
  %v410 = vld [vmem:[%s3 + $0x58] sm:$0xf]
  %v411 = vld [vmem:[%s3 + $0x5c] sm:$0xf]
  %v412 = vld [vmem:[%s3 + $0x60] sm:$0xf]
  %v413 = vld [vmem:[%s3 + $0x64] sm:$0xf]
  %v414 = vld [vmem:[%s3 + $0x68] sm:$0xf]
  %v415 = vld [vmem:[%s3 + $0x6c] sm:$0xf]
  %v416 = vld [vmem:[%s3 + $0x70] sm:$0xf]
  %v417 = vld [vmem:[%s3 + $0x74] sm:$0xf]
  %v418 = vld [vmem:[%s3 + $0x78] sm:$0xf]
  %v419 = vld [vmem:[%s3 + $0x7c] sm:$0xf]
  %v420 = vld [vmem:[%s3 + $0x80] sm:$0xf]
  %v421 = vld [vmem:[%s3 + $0x84] sm:$0xf]
  %v422 = vld [vmem:[%s3 + $0x88] sm:$0xf]
  %v423 = vld [vmem:[%s3 + $0x8c] sm:$0xf]
  %v424 = vld [vmem:[%s3 + $0x90] sm:$0xf]
  %v425 = vld [vmem:[%s3 + $0x94] sm:$0xf]
  %v426 = vld [vmem:[%s3 + $0x98] sm:$0xf]
  %v427 = vld [vmem:[%s3 + $0x9c] sm:$0xf]
  %v428 = vld [vmem:[%s3 + $0xa0] sm:$0xf]
  %v429 = vld [vmem:[%s3 + $0xa4] sm:$0xf]
  %v430 = vld [vmem:[%s3 + $0xa8] sm:$0xf]
  %v431 = vld [vmem:[%s3 + $0xac] sm:$0xf]
  %v432 = vld [vmem:[%s3 + $0xb0] sm:$0xf]
  %v433 = vld [vmem:[%s3 + $0xb4] sm:$0xf]
  %v434 = vld [vmem:[%s3 + $0xb8] sm:$0xf]
  %v435 = vld [vmem:[%s3 + $0xbc] sm:$0xf]
  %v436 = vld [vmem:[%s4] sm:$0x1]
  %v438 = vlaneseq
  %v439 = vshrl.u32 %v438, 7
  %v440 = vsub.s32 0, %v439
  %v441 = vrot.slane %v436, %v440
  %v443 = vadd.f32 %v441, %v21
  %v444 = vadd.f32 %v441, %v22
  %v445 = vadd.f32 %v441, %v23
  %v446 = vadd.f32 %v441, %v24
  %v495 = vunpack.c.l.b16 %v388
  %v496 = vunpack.c.l.b16 %v389
  %v497 = vunpack.c.l.b16 %v390
  %v498 = vunpack.c.l.b16 %v391
  %v499 = vunpack.c.l.b16 %v392
  %v500 = vunpack.c.l.b16 %v393
  %v501 = vunpack.c.l.b16 %v394
  %v502 = vunpack.c.l.b16 %v395
  %v503 = vunpack.c.l.b16 %v396
  %v504 = vunpack.c.l.b16 %v397
  %v505 = vunpack.c.l.b16 %v398
  %v506 = vunpack.c.l.b16 %v399
  %v507 = vunpack.c.l.b16 %v400
  %v508 = vunpack.c.l.b16 %v401
  %v509 = vunpack.c.l.b16 %v402
  %v510 = vunpack.c.l.b16 %v403
  %v511 = vunpack.c.l.b16 %v404
  %v512 = vunpack.c.l.b16 %v405
  %v513 = vunpack.c.l.b16 %v406
  %v514 = vunpack.c.l.b16 %v407
  %v515 = vunpack.c.l.b16 %v408
  %v516 = vunpack.c.l.b16 %v409
  %v517 = vunpack.c.l.b16 %v410
  %v518 = vunpack.c.l.b16 %v411
  %v519 = vunpack.c.l.b16 %v412
  %v520 = vunpack.c.l.b16 %v413
  %v521 = vunpack.c.l.b16 %v414
  %v522 = vunpack.c.l.b16 %v415
  %v523 = vunpack.c.l.b16 %v416
  %v524 = vunpack.c.l.b16 %v417
  %v525 = vunpack.c.l.b16 %v418
  %v526 = vunpack.c.l.b16 %v419
  %v527 = vunpack.c.l.b16 %v420
  %v528 = vunpack.c.l.b16 %v421
  %v529 = vunpack.c.l.b16 %v422
  %v530 = vunpack.c.l.b16 %v423
  %v531 = vunpack.c.l.b16 %v424
  %v532 = vunpack.c.l.b16 %v425
  %v533 = vunpack.c.l.b16 %v426
  %v534 = vunpack.c.l.b16 %v427
  %v535 = vunpack.c.l.b16 %v428
  %v536 = vunpack.c.l.b16 %v429
  %v537 = vunpack.c.l.b16 %v430
  %v538 = vunpack.c.l.b16 %v431
  %v539 = vunpack.c.l.b16 %v432
  %v540 = vunpack.c.l.b16 %v433
  %v541 = vunpack.c.l.b16 %v434
  %v542 = vunpack.c.l.b16 %v435
  %v543 = vpack.c.b16 %v496, %v495
  %v544 = vpack.c.b16 %v498, %v497
  %v545 = vpack.c.b16 %v500, %v499
  %v546 = vpack.c.b16 %v502, %v501
  %v547 = vpack.c.b16 %v504, %v503
  %v548 = vpack.c.b16 %v506, %v505
  %v549 = vpack.c.b16 %v508, %v507
  %v550 = vpack.c.b16 %v510, %v509
  %v551 = vpack.c.b16 %v512, %v511
  %v552 = vpack.c.b16 %v514, %v513
  %v553 = vpack.c.b16 %v516, %v515
  %v554 = vpack.c.b16 %v518, %v517
  %v555 = vpack.c.b16 %v520, %v519
  %v556 = vpack.c.b16 %v522, %v521
  %v557 = vpack.c.b16 %v524, %v523
  %v558 = vpack.c.b16 %v526, %v525
  %v559 = vpack.c.b16 %v528, %v527
  %v560 = vpack.c.b16 %v530, %v529
  %v561 = vpack.c.b16 %v532, %v531
  %v562 = vpack.c.b16 %v534, %v533
  %v563 = vpack.c.b16 %v536, %v535
  %v564 = vpack.c.b16 %v538, %v537
  %v565 = vpack.c.b16 %v540, %v539
  %v566 = vpack.c.b16 %v542, %v541
  %591 = vmatprep.subr.bf16.mxu0 0
  %592 = vmatpush1.bf16.msra.mxu0 %v543
  %593 = vmatprep.subr.bf16.mxu0 0
  %594 = vmatpush1.bf16.msra.mxu0 %v544
  %595 = vmatprep.subr.bf16.mxu0 0
  %596 = vmatpush1.bf16.msra.mxu0 %v545
  %597 = vmatprep.subr.bf16.mxu0 0
  %598 = vmatpush1.bf16.msra.mxu0 %v546
  %599 = vmatprep.subr.bf16.mxu0 0
  %600 = vmatpush1.bf16.msra.mxu0 %v547
  %601 = vmatprep.subr.bf16.mxu0 0
  %602 = vmatpush1.bf16.msra.mxu0 %v548
  %603 = vmatprep.subr.bf16.mxu0 0
  %604 = vmatpush1.bf16.msra.mxu0 %v549
  %605 = vmatprep.subr.bf16.mxu0 0
  %606 = vmatpush1.bf16.msra.mxu0 %v550
  %607 = vmatprep.subr.bf16.mxu0 0
  %608 = vmatpush1.bf16.msra.mxu0 %v551
  %609 = vmatprep.subr.bf16.mxu0 0
  %610 = vmatpush1.bf16.msra.mxu0 %v552
  %611 = vmatprep.subr.bf16.mxu0 0
  %612 = vmatpush1.bf16.msra.mxu0 %v553
  %613 = vmatprep.subr.bf16.mxu0 0
  %614 = vmatpush1.bf16.msra.mxu0 %v554
  %615 = vmatprep.subr.bf16.mxu0 0
  %616 = vmatpush1.bf16.msra.mxu0 %v555
  %617 = vmatprep.subr.bf16.mxu0 0
  %618 = vmatpush1.bf16.msra.mxu0 %v556
  %619 = vmatprep.subr.bf16.mxu0 0
  %620 = vmatpush1.bf16.msra.mxu0 %v557
  %621 = vmatprep.subr.bf16.mxu0 0
  %622 = vmatpush1.bf16.msra.mxu0 %v558
  %623 = vmatprep.mubr.bf16.mxu0 %v360
  %624 = vmatmul.mubr.bf16.gmra.mrb[0].mxu0 %v378
  %v625 = vpop.f32.mrb[0].mxu0
  %v626 = vadd.f32 %v443, %v625
  %v627 = vpop.f32.mrb[0].mxu0
  %v628 = vpop.f32.mrb[0].mxu0
  %v629 = vadd.f32 %v444, %v628
  %v630 = vpop.f32.mrb[0].mxu0
  %631 = vmatprep.mubr.bf16.mxu0 %v361
  %632 = vmatmul.mubr.bf16.gmra.mrb[0].mxu0 %v379
  %v633 = vpop.f32.mrb[0].mxu0
  %v634 = vadd.f32 %v445, %v633
  %v635 = vpop.f32.mrb[0].mxu0
  %v636 = vpop.f32.mrb[0].mxu0
  %v637 = vadd.f32 %v446, %v636
  %v638 = vpop.f32.mrb[0].mxu0
  %639 = vdwg.mxu0
  %640 = vmatprep.subr.bf16.mxu0 0
  %641 = vmatpush1.bf16.msra.mxu0 %v559
  %642 = vmatprep.subr.bf16.mxu0 0
  %643 = vmatpush1.bf16.msra.mxu0 %v560
  %644 = vmatprep.subr.bf16.mxu0 0
  %645 = vmatpush1.bf16.msra.mxu0 %v561
  %646 = vmatprep.subr.bf16.mxu0 0
  %647 = vmatpush1.bf16.msra.mxu0 %v562
  %648 = vmatprep.subr.bf16.mxu0 0
  %649 = vmatpush1.bf16.msra.mxu0 %v563
  %650 = vmatprep.subr.bf16.mxu0 0
  %651 = vmatpush1.bf16.msra.mxu0 %v564
  %652 = vmatprep.subr.bf16.mxu0 0
  %653 = vmatpush1.bf16.msra.mxu0 %v565
  %654 = vmatprep.subr.bf16.mxu0 0
  %655 = vmatpush1.bf16.msra.mxu0 %v566
  %656 = vmatprep.subr.bf16.mxu0 0
  %657 = vmatpush1.bf16.msra.mxu0 0
  %658 = vmatprep.subr.bf16.mxu0 0
  %659 = vmatpush1.bf16.msra.mxu0 0
  %660 = vmatprep.subr.bf16.mxu0 0
  %661 = vmatpush1.bf16.msra.mxu0 0
  %662 = vmatprep.subr.bf16.mxu0 0
  %663 = vmatpush1.bf16.msra.mxu0 0
  %664 = vmatprep.subr.bf16.mxu0 0
  %665 = vmatpush1.bf16.msra.mxu0 0
  %666 = vmatprep.subr.bf16.mxu0 0
  %667 = vmatpush1.bf16.msra.mxu0 0
  %668 = vmatprep.subr.bf16.mxu0 0
  %669 = vmatpush1.bf16.msra.mxu0 0
  %670 = vmatprep.subr.bf16.mxu0 0
  %671 = vmatpush1.bf16.msra.mxu0 0
  %672 = vmatprep.mubr.bf16.mxu0 0
  %673 = vmatmul.mubr.bf16.gmra.mrb[0].mxu0 %v386
  %v674 = vpop.f32.mrb[0].mxu0
  %v675 = vadd.f32 %v626, %v674
  %v676 = vpop.f32.mrb[0].mxu0
  %v677 = vpop.f32.mrb[0].mxu0
  %v678 = vadd.f32 %v629, %v677
  %v679 = vpop.f32.mrb[0].mxu0
  %680 = vmatprep.mubr.bf16.mxu0 0
  %681 = vmatmul.mubr.bf16.gmra.mrb[0].mxu0 %v387
  %v682 = vpop.f32.mrb[0].mxu0
  %v683 = vadd.f32 %v634, %v682
  %v684 = vpop.f32.mrb[0].mxu0
  %v685 = vpop.f32.mrb[0].mxu0
  %v686 = vadd.f32 %v637, %v685
  %v687 = vpop.f32.mrb[0].mxu0
  %688 = vdwg.mxu0
  %689 = vst [vmem:[%s5] sm:$0xff] %v675
  %690 = vst [vmem:[%s5 + $0x8] sm:$0xff] %v678
  %691 = vst [vmem:[%s5 + $0x10] sm:$0xff] %v683
  %692 = vst [vmem:[%s5 + $0x18] sm:$0xff] %v686
  // Predicated region
  $region22: #{resblock_forward.1} parent=0 // pred_check
    _
  $region23: #{resblock_forward.1} parent=0 // pred_check_branch
    %694 = sbr.rel (0) target = $region25
  $region24: #{resblock_forward.1} parent=0 // pred_region
    _
  $region25: #{resblock_forward.1} parent=0 // pred_fallthru
    _
  // Predicated region
  $region26: #{resblock_forward.1} parent=0 // pred_check
    _
  $region27: #{resblock_forward.1} parent=0 // pred_check_branch
    %696 = sbr.rel (0) target = $region29
  $region28: #{resblock_forward.1} parent=0 // pred_region
    _
  $region29: #{resblock_forward.1} parent=0 // pred_fallthru
    _

</llo_original>
